<compile_context>
chip_gen: v7x
topology: tpu7x:2x2x1
jax: 0.10.0
libtpu: 0.0.40
codegen_flags: <defaults>
</compile_context>

<pallas_src>
import functools

import jax
import jax.numpy as jnp
from jax.experimental import pallas as pl
from jax.experimental.pallas import tpu as pltpu

_STRIDES = (1, 2, 2)  # strides of conv1 / conv2 / conv3 in the torch module


def _fused_convnet_kernel(params_ref, x_ref, o_ref, *, n, dims, h, w, ho, wo,
                          stride):
    """Fused 3-layer pointwise-conv chain + in-kernel spatial subsample.

    params_ref : (P,)            f32 SMEM -- all weights & biases packed flat.
    x_ref      : (n*c0, h*w)     f32 VMEM -- full-resolution input, lane-dense.
    o_ref      : (n*c_last, ho*wo) f32 VMEM.
    """
    hw = h * w
    c0 = dims[0][0]

    x = x_ref[...]                                     # (n*c0, hw), dense lanes

    # Pull every weight/bias scalar out of SMEM exactly once.
    n_params = sum(ci * co + co for ci, co in dims)
    p = [params_ref[i] for i in range(n_params)]

    # Three pointwise layers as pure VPU scalar*vector FMAs.  Computed at full
    # resolution: the stride-2 subsamples of conv2/conv3 commute through 1x1
    # convs (padding=0) and are applied once at the end.  Bias is a single
    # scalar add per output channel (no jnp.full broadcasts).
    final_rows = []
    for b in range(n):
        rows = [x[b * c0 + ci: b * c0 + ci + 1, :] for ci in range(c0)]
        off = 0
        for cin, cout in dims:
            w_off = off
            b_off = off + cin * cout
            off = b_off + cout
            nxt = []
            for co in range(cout):
                acc = p[w_off + co] * rows[0]
                for ci in range(1, cin):
                    acc = acc + p[w_off + ci * cout + co] * rows[ci]
                nxt.append(acc + p[b_off + co])
            rows = nxt
        final_rows.extend(rows)                        # n-major, channel-minor

    stacked = jnp.concatenate(final_rows, axis=0)      # (n*c_last, hw)

    # Exact spatial subsample (keep positions h = stride*hi, w = stride*wi):
    # one-hot rows  sel_t[q, pos] = 1  iff  pos == stride*w*hi + stride*wi,
    # with q = hi*wo + wi.  Mask + lane reduction only (VPU/XLU): bit-exact.
    wi = jax.lax.broadcasted_iota(jnp.int32, (wo, hw), 0)
    pi = jax.lax.broadcasted_iota(jnp.int32, (wo, hw), 1)
    blocks = [jnp.where(pi == (stride * w * hi + stride * wi), 1.0, 0.0)
              for hi in range(ho)]
    sel_t = jnp.concatenate(blocks, axis=0)            # (ho*wo, hw) one-hot f32

    picked = stacked[:, None, :] * sel_t[None, :, :]   # (n*c_last, ho*wo, hw)
    # Single full-slab store instead of per-channel partial stores.
    o_ref[...] = jnp.sum(picked, axis=-1)              # (n*c_last, ho*wo)


def small_conv_net_forward(x_nchw, params):
    """Forward pass of SmallConvNet.  Input/output are NCHW (matches torch)."""
    (w1, b1), (w2, b2), (w3, b3) = params
    N, C, H, W = x_nchw.shape

    # Output spatial size of the stride-1/2/2 chain (kernel_size=1, pad=0).
    stride_total = 1
    Ho, Wo = H, W
    for s in _STRIDES:
        Ho = (Ho - 1) // s + 1
        Wo = (Wo - 1) // s + 1
        stride_total *= s

    dims = ((w1.shape[0], w1.shape[1]),
            (w2.shape[0], w2.shape[1]),
            (w3.shape[0], w3.shape[1]))
    c_out = dims[-1][1]

    # All weights/biases packed into ONE flat f32 vector -> a single tiny SMEM
    # DMA instead of six separately padded SMEM inputs.
    flat_params = jnp.concatenate(
        [w1.reshape(-1), b1.reshape(-1), w2.reshape(-1), b2.reshape(-1),
         w3.reshape(-1), b3.reshape(-1)]).astype(jnp.float32)

    # Free reshape: NCHW -> (N*C, H*W).  Lane-dense and no pre-kernel
    # strided-slice HLO: the [::4, ::4] subsample happens inside the kernel.
    x2d = x_nchw.reshape(N * C, H * W).astype(jnp.float32)

    kernel = functools.partial(_fused_convnet_kernel, n=N, dims=dims, h=H, w=W,
                               ho=Ho, wo=Wo, stride=stride_total)

    flops = 2 * N * H * W * sum(ci * co for ci, co in dims)
    bytes_accessed = (x2d.size + flat_params.size + N * c_out * Ho * Wo) * 4

    out = pl.pallas_call(
        kernel,
        out_shape=jax.ShapeDtypeStruct((N * c_out, Ho * Wo), jnp.float32),
        in_specs=[pl.BlockSpec(memory_space=pltpu.MemorySpace.SMEM),
                  pl.BlockSpec(memory_space=pltpu.MemorySpace.VMEM)],
        out_specs=pl.BlockSpec(memory_space=pltpu.MemorySpace.VMEM),
        cost_estimate=pl.CostEstimate(flops=int(flops), transcendentals=0,
                                      bytes_accessed=int(bytes_accessed)),
    )(flat_params, x2d)

    return out.reshape(N, c_out, Ho, Wo)               # free reshape, NCHW


def init_params(input_dim: int, key):
    """Deterministic parameter init matching the torch module's layer shapes."""
    conv_dims = [input_dim, 8, 4, 2]
    params = []
    for i in range(3):
        cin, cout = conv_dims[i], conv_dims[i + 1]
        key, kw, kb = jax.random.split(key, 3)
        bound = 1.0 / jnp.sqrt(cin)  # fan_in for a 1x1 kernel
        # stored directly as (Cin, Cout) for the channel-mixing formulation
        w = jax.random.uniform(kw, (cin, cout), jnp.float32, -bound, bound)
        b = jax.random.uniform(kb, (cout,), jnp.float32, -bound, bound)
        params.append((w, b))
    return params


def _reference_forward(x_nchw, params):
    """Pure-JAX reference: full layer-by-layer conv (stride applied per layer)."""
    x = x_nchw
    for (w, b), s in zip(params, _STRIDES):
        if s > 1:
            x = x[:, :, ::s, ::s]
        x = jnp.einsum("nchw,co->nohw", x, w,
                       precision=jax.lax.Precision.HIGHEST)
        x = x + b[None, :, None, None]
    return x


if __name__ == "__main__":
    key = jax.random.PRNGKey(0)
    k_in, k_params = jax.random.split(key)

    N, C, H, W = 2, 4, 16, 16  # input_dim = 4
    x = jax.random.normal(k_in, (N, C, H, W), jnp.float32)
    params = init_params(C, k_params)

    fwd = jax.jit(small_conv_net_forward)
    out = jax.block_until_ready(fwd(x, params))

    # shape check: conv1 (s=1) -> 16x16, conv2 (s=2) -> 8x8, conv3 (s=2) -> 4x4
    assert out.shape == (N, 2, 4, 4), out.shape

    ref = jax.block_until_ready(_reference_forward(x, params))
    assert jnp.allclose(out, ref, atol=1e-5, rtol=1e-5), float(
        jnp.max(jnp.abs(out - ref)))

    print("KERNEL_OK")
</pallas_src>

<mosaic_0001>
module attributes {stable_mosaic.version = 11 : i64} {
  func.func @_fused_convnet_kernel(%arg0: memref<86xf32, #tpu.memory_space<smem>>, %arg1: memref<8x256xf32, #tpu.memory_space<vmem>>, %arg2: memref<4x16xf32, #tpu.memory_space<vmem>>) attributes {dimension_semantics = [], scalar_prefetch = 0 : i64, scratch_operands = 0 : i64, tpu.core_type = #tpu.core_type<tc>} {
    %c0 = arith.constant 0 : index
    %c0_0 = arith.constant 0 : index
    %0 = vector.load %arg1[%c0, %c0_0] : memref<8x256xf32, #tpu.memory_space<vmem>>, vector<8x256xf32>
    %c0_1 = arith.constant 0 : index
    %1 = memref.load %arg0[%c0_1] : memref<86xf32, #tpu.memory_space<smem>>
    %c1 = arith.constant 1 : index
    %2 = memref.load %arg0[%c1] : memref<86xf32, #tpu.memory_space<smem>>
    %c2 = arith.constant 2 : index
    %3 = memref.load %arg0[%c2] : memref<86xf32, #tpu.memory_space<smem>>
    %c3 = arith.constant 3 : index
    %4 = memref.load %arg0[%c3] : memref<86xf32, #tpu.memory_space<smem>>
    %c4 = arith.constant 4 : index
    %5 = memref.load %arg0[%c4] : memref<86xf32, #tpu.memory_space<smem>>
    %c5 = arith.constant 5 : index
    %6 = memref.load %arg0[%c5] : memref<86xf32, #tpu.memory_space<smem>>
    %c6 = arith.constant 6 : index
    %7 = memref.load %arg0[%c6] : memref<86xf32, #tpu.memory_space<smem>>
    %c7 = arith.constant 7 : index
    %8 = memref.load %arg0[%c7] : memref<86xf32, #tpu.memory_space<smem>>
    %c8 = arith.constant 8 : index
    %9 = memref.load %arg0[%c8] : memref<86xf32, #tpu.memory_space<smem>>
    %c9 = arith.constant 9 : index
    %10 = memref.load %arg0[%c9] : memref<86xf32, #tpu.memory_space<smem>>
    %c10 = arith.constant 10 : index
    %11 = memref.load %arg0[%c10] : memref<86xf32, #tpu.memory_space<smem>>
    %c11 = arith.constant 11 : index
    %12 = memref.load %arg0[%c11] : memref<86xf32, #tpu.memory_space<smem>>
    %c12 = arith.constant 12 : index
    %13 = memref.load %arg0[%c12] : memref<86xf32, #tpu.memory_space<smem>>
    %c13 = arith.constant 13 : index
    %14 = memref.load %arg0[%c13] : memref<86xf32, #tpu.memory_space<smem>>
    %c14 = arith.constant 14 : index
    %15 = memref.load %arg0[%c14] : memref<86xf32, #tpu.memory_space<smem>>
    %c15 = arith.constant 15 : index
    %16 = memref.load %arg0[%c15] : memref<86xf32, #tpu.memory_space<smem>>
    %c16 = arith.constant 16 : index
    %17 = memref.load %arg0[%c16] : memref<86xf32, #tpu.memory_space<smem>>
    %c17 = arith.constant 17 : index
    %18 = memref.load %arg0[%c17] : memref<86xf32, #tpu.memory_space<smem>>
    %c18 = arith.constant 18 : index
    %19 = memref.load %arg0[%c18] : memref<86xf32, #tpu.memory_space<smem>>
    %c19 = arith.constant 19 : index
    %20 = memref.load %arg0[%c19] : memref<86xf32, #tpu.memory_space<smem>>
    %c20 = arith.constant 20 : index
    %21 = memref.load %arg0[%c20] : memref<86xf32, #tpu.memory_space<smem>>
    %c21 = arith.constant 21 : index
    %22 = memref.load %arg0[%c21] : memref<86xf32, #tpu.memory_space<smem>>
    %c22 = arith.constant 22 : index
    %23 = memref.load %arg0[%c22] : memref<86xf32, #tpu.memory_space<smem>>
    %c23 = arith.constant 23 : index
    %24 = memref.load %arg0[%c23] : memref<86xf32, #tpu.memory_space<smem>>
    %c24 = arith.constant 24 : index
    %25 = memref.load %arg0[%c24] : memref<86xf32, #tpu.memory_space<smem>>
    %c25 = arith.constant 25 : index
    %26 = memref.load %arg0[%c25] : memref<86xf32, #tpu.memory_space<smem>>
    %c26 = arith.constant 26 : index
    %27 = memref.load %arg0[%c26] : memref<86xf32, #tpu.memory_space<smem>>
    %c27 = arith.constant 27 : index
    %28 = memref.load %arg0[%c27] : memref<86xf32, #tpu.memory_space<smem>>
    %c28 = arith.constant 28 : index
    %29 = memref.load %arg0[%c28] : memref<86xf32, #tpu.memory_space<smem>>
    %c29 = arith.constant 29 : index
    %30 = memref.load %arg0[%c29] : memref<86xf32, #tpu.memory_space<smem>>
    %c30 = arith.constant 30 : index
    %31 = memref.load %arg0[%c30] : memref<86xf32, #tpu.memory_space<smem>>
    %c31 = arith.constant 31 : index
    %32 = memref.load %arg0[%c31] : memref<86xf32, #tpu.memory_space<smem>>
    %c32 = arith.constant 32 : index
    %33 = memref.load %arg0[%c32] : memref<86xf32, #tpu.memory_space<smem>>
    %c33 = arith.constant 33 : index
    %34 = memref.load %arg0[%c33] : memref<86xf32, #tpu.memory_space<smem>>
    %c34 = arith.constant 34 : index
    %35 = memref.load %arg0[%c34] : memref<86xf32, #tpu.memory_space<smem>>
    %c35 = arith.constant 35 : index
    %36 = memref.load %arg0[%c35] : memref<86xf32, #tpu.memory_space<smem>>
    %c36 = arith.constant 36 : index
    %37 = memref.load %arg0[%c36] : memref<86xf32, #tpu.memory_space<smem>>
    %c37 = arith.constant 37 : index
    %38 = memref.load %arg0[%c37] : memref<86xf32, #tpu.memory_space<smem>>
    %c38 = arith.constant 38 : index
    %39 = memref.load %arg0[%c38] : memref<86xf32, #tpu.memory_space<smem>>
    %c39 = arith.constant 39 : index
    %40 = memref.load %arg0[%c39] : memref<86xf32, #tpu.memory_space<smem>>
    %c40 = arith.constant 40 : index
    %41 = memref.load %arg0[%c40] : memref<86xf32, #tpu.memory_space<smem>>
    %c41 = arith.constant 41 : index
    %42 = memref.load %arg0[%c41] : memref<86xf32, #tpu.memory_space<smem>>
    %c42 = arith.constant 42 : index
    %43 = memref.load %arg0[%c42] : memref<86xf32, #tpu.memory_space<smem>>
    %c43 = arith.constant 43 : index
    %44 = memref.load %arg0[%c43] : memref<86xf32, #tpu.memory_space<smem>>
    %c44 = arith.constant 44 : index
    %45 = memref.load %arg0[%c44] : memref<86xf32, #tpu.memory_space<smem>>
    %c45 = arith.constant 45 : index
    %46 = memref.load %arg0[%c45] : memref<86xf32, #tpu.memory_space<smem>>
    %c46 = arith.constant 46 : index
    %47 = memref.load %arg0[%c46] : memref<86xf32, #tpu.memory_space<smem>>
    %c47 = arith.constant 47 : index
    %48 = memref.load %arg0[%c47] : memref<86xf32, #tpu.memory_space<smem>>
    %c48 = arith.constant 48 : index
    %49 = memref.load %arg0[%c48] : memref<86xf32, #tpu.memory_space<smem>>
    %c49 = arith.constant 49 : index
    %50 = memref.load %arg0[%c49] : memref<86xf32, #tpu.memory_space<smem>>
    %c50 = arith.constant 50 : index
    %51 = memref.load %arg0[%c50] : memref<86xf32, #tpu.memory_space<smem>>
    %c51 = arith.constant 51 : index
    %52 = memref.load %arg0[%c51] : memref<86xf32, #tpu.memory_space<smem>>
    %c52 = arith.constant 52 : index
    %53 = memref.load %arg0[%c52] : memref<86xf32, #tpu.memory_space<smem>>
    %c53 = arith.constant 53 : index
    %54 = memref.load %arg0[%c53] : memref<86xf32, #tpu.memory_space<smem>>
    %c54 = arith.constant 54 : index
    %55 = memref.load %arg0[%c54] : memref<86xf32, #tpu.memory_space<smem>>
    %c55 = arith.constant 55 : index
    %56 = memref.load %arg0[%c55] : memref<86xf32, #tpu.memory_space<smem>>
    %c56 = arith.constant 56 : index
    %57 = memref.load %arg0[%c56] : memref<86xf32, #tpu.memory_space<smem>>
    %c57 = arith.constant 57 : index
    %58 = memref.load %arg0[%c57] : memref<86xf32, #tpu.memory_space<smem>>
    %c58 = arith.constant 58 : index
    %59 = memref.load %arg0[%c58] : memref<86xf32, #tpu.memory_space<smem>>
    %c59 = arith.constant 59 : index
    %60 = memref.load %arg0[%c59] : memref<86xf32, #tpu.memory_space<smem>>
    %c60 = arith.constant 60 : index
    %61 = memref.load %arg0[%c60] : memref<86xf32, #tpu.memory_space<smem>>
    %c61 = arith.constant 61 : index
    %62 = memref.load %arg0[%c61] : memref<86xf32, #tpu.memory_space<smem>>
    %c62 = arith.constant 62 : index
    %63 = memref.load %arg0[%c62] : memref<86xf32, #tpu.memory_space<smem>>
    %c63 = arith.constant 63 : index
    %64 = memref.load %arg0[%c63] : memref<86xf32, #tpu.memory_space<smem>>
    %c64 = arith.constant 64 : index
    %65 = memref.load %arg0[%c64] : memref<86xf32, #tpu.memory_space<smem>>
    %c65 = arith.constant 65 : index
    %66 = memref.load %arg0[%c65] : memref<86xf32, #tpu.memory_space<smem>>
    %c66 = arith.constant 66 : index
    %67 = memref.load %arg0[%c66] : memref<86xf32, #tpu.memory_space<smem>>
    %c67 = arith.constant 67 : index
    %68 = memref.load %arg0[%c67] : memref<86xf32, #tpu.memory_space<smem>>
    %c68 = arith.constant 68 : index
    %69 = memref.load %arg0[%c68] : memref<86xf32, #tpu.memory_space<smem>>
    %c69 = arith.constant 69 : index
    %70 = memref.load %arg0[%c69] : memref<86xf32, #tpu.memory_space<smem>>
    %c70 = arith.constant 70 : index
    %71 = memref.load %arg0[%c70] : memref<86xf32, #tpu.memory_space<smem>>
    %c71 = arith.constant 71 : index
    %72 = memref.load %arg0[%c71] : memref<86xf32, #tpu.memory_space<smem>>
    %c72 = arith.constant 72 : index
    %73 = memref.load %arg0[%c72] : memref<86xf32, #tpu.memory_space<smem>>
    %c73 = arith.constant 73 : index
    %74 = memref.load %arg0[%c73] : memref<86xf32, #tpu.memory_space<smem>>
    %c74 = arith.constant 74 : index
    %75 = memref.load %arg0[%c74] : memref<86xf32, #tpu.memory_space<smem>>
    %c75 = arith.constant 75 : index
    %76 = memref.load %arg0[%c75] : memref<86xf32, #tpu.memory_space<smem>>
    %c76 = arith.constant 76 : index
    %77 = memref.load %arg0[%c76] : memref<86xf32, #tpu.memory_space<smem>>
    %c77 = arith.constant 77 : index
    %78 = memref.load %arg0[%c77] : memref<86xf32, #tpu.memory_space<smem>>
    %c78 = arith.constant 78 : index
    %79 = memref.load %arg0[%c78] : memref<86xf32, #tpu.memory_space<smem>>
    %c79 = arith.constant 79 : index
    %80 = memref.load %arg0[%c79] : memref<86xf32, #tpu.memory_space<smem>>
    %c80 = arith.constant 80 : index
    %81 = memref.load %arg0[%c80] : memref<86xf32, #tpu.memory_space<smem>>
    %c81 = arith.constant 81 : index
    %82 = memref.load %arg0[%c81] : memref<86xf32, #tpu.memory_space<smem>>
    %c82 = arith.constant 82 : index
    %83 = memref.load %arg0[%c82] : memref<86xf32, #tpu.memory_space<smem>>
    %c83 = arith.constant 83 : index
    %84 = memref.load %arg0[%c83] : memref<86xf32, #tpu.memory_space<smem>>
    %c84 = arith.constant 84 : index
    %85 = memref.load %arg0[%c84] : memref<86xf32, #tpu.memory_space<smem>>
    %c85 = arith.constant 85 : index
    %86 = memref.load %arg0[%c85] : memref<86xf32, #tpu.memory_space<smem>>
    %87 = vector.extract_strided_slice %0 {offsets = [0, 0], sizes = [1, 256], strides = [1, 1]} : vector<8x256xf32> to vector<1x256xf32>
    %88 = vector.extract_strided_slice %0 {offsets = [1, 0], sizes = [1, 256], strides = [1, 1]} : vector<8x256xf32> to vector<1x256xf32>
    %89 = vector.extract_strided_slice %0 {offsets = [2, 0], sizes = [1, 256], strides = [1, 1]} : vector<8x256xf32> to vector<1x256xf32>
    %90 = vector.extract_strided_slice %0 {offsets = [3, 0], sizes = [1, 256], strides = [1, 1]} : vector<8x256xf32> to vector<1x256xf32>
    %91 = vector.broadcast %1 : f32 to vector<1x256xf32>
    %92 = arith.mulf %91, %87 : vector<1x256xf32>
    %93 = vector.broadcast %9 : f32 to vector<1x256xf32>
    %94 = arith.mulf %93, %88 : vector<1x256xf32>
    %95 = arith.addf %92, %94 : vector<1x256xf32>
    %96 = vector.broadcast %17 : f32 to vector<1x256xf32>
    %97 = arith.mulf %96, %89 : vector<1x256xf32>
    %98 = arith.addf %95, %97 : vector<1x256xf32>
    %99 = vector.broadcast %25 : f32 to vector<1x256xf32>
    %100 = arith.mulf %99, %90 : vector<1x256xf32>
    %101 = arith.addf %98, %100 : vector<1x256xf32>
    %102 = vector.broadcast %33 : f32 to vector<1x256xf32>
    %103 = arith.addf %101, %102 : vector<1x256xf32>
    %104 = vector.broadcast %2 : f32 to vector<1x256xf32>
    %105 = arith.mulf %104, %87 : vector<1x256xf32>
    %106 = vector.broadcast %10 : f32 to vector<1x256xf32>
    %107 = arith.mulf %106, %88 : vector<1x256xf32>
    %108 = arith.addf %105, %107 : vector<1x256xf32>
    %109 = vector.broadcast %18 : f32 to vector<1x256xf32>
    %110 = arith.mulf %109, %89 : vector<1x256xf32>
    %111 = arith.addf %108, %110 : vector<1x256xf32>
    %112 = vector.broadcast %26 : f32 to vector<1x256xf32>
    %113 = arith.mulf %112, %90 : vector<1x256xf32>
    %114 = arith.addf %111, %113 : vector<1x256xf32>
    %115 = vector.broadcast %34 : f32 to vector<1x256xf32>
    %116 = arith.addf %114, %115 : vector<1x256xf32>
    %117 = vector.broadcast %3 : f32 to vector<1x256xf32>
    %118 = arith.mulf %117, %87 : vector<1x256xf32>
    %119 = vector.broadcast %11 : f32 to vector<1x256xf32>
    %120 = arith.mulf %119, %88 : vector<1x256xf32>
    %121 = arith.addf %118, %120 : vector<1x256xf32>
    %122 = vector.broadcast %19 : f32 to vector<1x256xf32>
    %123 = arith.mulf %122, %89 : vector<1x256xf32>
    %124 = arith.addf %121, %123 : vector<1x256xf32>
    %125 = vector.broadcast %27 : f32 to vector<1x256xf32>
    %126 = arith.mulf %125, %90 : vector<1x256xf32>
    %127 = arith.addf %124, %126 : vector<1x256xf32>
    %128 = vector.broadcast %35 : f32 to vector<1x256xf32>
    %129 = arith.addf %127, %128 : vector<1x256xf32>
    %130 = vector.broadcast %4 : f32 to vector<1x256xf32>
    %131 = arith.mulf %130, %87 : vector<1x256xf32>
    %132 = vector.broadcast %12 : f32 to vector<1x256xf32>
    %133 = arith.mulf %132, %88 : vector<1x256xf32>
    %134 = arith.addf %131, %133 : vector<1x256xf32>
    %135 = vector.broadcast %20 : f32 to vector<1x256xf32>
    %136 = arith.mulf %135, %89 : vector<1x256xf32>
    %137 = arith.addf %134, %136 : vector<1x256xf32>
    %138 = vector.broadcast %28 : f32 to vector<1x256xf32>
    %139 = arith.mulf %138, %90 : vector<1x256xf32>
    %140 = arith.addf %137, %139 : vector<1x256xf32>
    %141 = vector.broadcast %36 : f32 to vector<1x256xf32>
    %142 = arith.addf %140, %141 : vector<1x256xf32>
    %143 = vector.broadcast %5 : f32 to vector<1x256xf32>
    %144 = arith.mulf %143, %87 : vector<1x256xf32>
    %145 = vector.broadcast %13 : f32 to vector<1x256xf32>
    %146 = arith.mulf %145, %88 : vector<1x256xf32>
    %147 = arith.addf %144, %146 : vector<1x256xf32>
    %148 = vector.broadcast %21 : f32 to vector<1x256xf32>
    %149 = arith.mulf %148, %89 : vector<1x256xf32>
    %150 = arith.addf %147, %149 : vector<1x256xf32>
    %151 = vector.broadcast %29 : f32 to vector<1x256xf32>
    %152 = arith.mulf %151, %90 : vector<1x256xf32>
    %153 = arith.addf %150, %152 : vector<1x256xf32>
    %154 = vector.broadcast %37 : f32 to vector<1x256xf32>
    %155 = arith.addf %153, %154 : vector<1x256xf32>
    %156 = vector.broadcast %6 : f32 to vector<1x256xf32>
    %157 = arith.mulf %156, %87 : vector<1x256xf32>
    %158 = vector.broadcast %14 : f32 to vector<1x256xf32>
    %159 = arith.mulf %158, %88 : vector<1x256xf32>
    %160 = arith.addf %157, %159 : vector<1x256xf32>
    %161 = vector.broadcast %22 : f32 to vector<1x256xf32>
    %162 = arith.mulf %161, %89 : vector<1x256xf32>
    %163 = arith.addf %160, %162 : vector<1x256xf32>
    %164 = vector.broadcast %30 : f32 to vector<1x256xf32>
    %165 = arith.mulf %164, %90 : vector<1x256xf32>
    %166 = arith.addf %163, %165 : vector<1x256xf32>
    %167 = vector.broadcast %38 : f32 to vector<1x256xf32>
    %168 = arith.addf %166, %167 : vector<1x256xf32>
    %169 = vector.broadcast %7 : f32 to vector<1x256xf32>
    %170 = arith.mulf %169, %87 : vector<1x256xf32>
    %171 = vector.broadcast %15 : f32 to vector<1x256xf32>
    %172 = arith.mulf %171, %88 : vector<1x256xf32>
    %173 = arith.addf %170, %172 : vector<1x256xf32>
    %174 = vector.broadcast %23 : f32 to vector<1x256xf32>
    %175 = arith.mulf %174, %89 : vector<1x256xf32>
    %176 = arith.addf %173, %175 : vector<1x256xf32>
    %177 = vector.broadcast %31 : f32 to vector<1x256xf32>
    %178 = arith.mulf %177, %90 : vector<1x256xf32>
    %179 = arith.addf %176, %178 : vector<1x256xf32>
    %180 = vector.broadcast %39 : f32 to vector<1x256xf32>
    %181 = arith.addf %179, %180 : vector<1x256xf32>
    %182 = vector.broadcast %8 : f32 to vector<1x256xf32>
    %183 = arith.mulf %182, %87 : vector<1x256xf32>
    %184 = vector.broadcast %16 : f32 to vector<1x256xf32>
    %185 = arith.mulf %184, %88 : vector<1x256xf32>
    %186 = arith.addf %183, %185 : vector<1x256xf32>
    %187 = vector.broadcast %24 : f32 to vector<1x256xf32>
    %188 = arith.mulf %187, %89 : vector<1x256xf32>
    %189 = arith.addf %186, %188 : vector<1x256xf32>
    %190 = vector.broadcast %32 : f32 to vector<1x256xf32>
    %191 = arith.mulf %190, %90 : vector<1x256xf32>
    %192 = arith.addf %189, %191 : vector<1x256xf32>
    %193 = vector.broadcast %40 : f32 to vector<1x256xf32>
    %194 = arith.addf %192, %193 : vector<1x256xf32>
    %195 = vector.broadcast %41 : f32 to vector<1x256xf32>
    %196 = arith.mulf %195, %103 : vector<1x256xf32>
    %197 = vector.broadcast %45 : f32 to vector<1x256xf32>
    %198 = arith.mulf %197, %116 : vector<1x256xf32>
    %199 = arith.addf %196, %198 : vector<1x256xf32>
    %200 = vector.broadcast %49 : f32 to vector<1x256xf32>
    %201 = arith.mulf %200, %129 : vector<1x256xf32>
    %202 = arith.addf %199, %201 : vector<1x256xf32>
    %203 = vector.broadcast %53 : f32 to vector<1x256xf32>
    %204 = arith.mulf %203, %142 : vector<1x256xf32>
    %205 = arith.addf %202, %204 : vector<1x256xf32>
    %206 = vector.broadcast %57 : f32 to vector<1x256xf32>
    %207 = arith.mulf %206, %155 : vector<1x256xf32>
    %208 = arith.addf %205, %207 : vector<1x256xf32>
    %209 = vector.broadcast %61 : f32 to vector<1x256xf32>
    %210 = arith.mulf %209, %168 : vector<1x256xf32>
    %211 = arith.addf %208, %210 : vector<1x256xf32>
    %212 = vector.broadcast %65 : f32 to vector<1x256xf32>
    %213 = arith.mulf %212, %181 : vector<1x256xf32>
    %214 = arith.addf %211, %213 : vector<1x256xf32>
    %215 = vector.broadcast %69 : f32 to vector<1x256xf32>
    %216 = arith.mulf %215, %194 : vector<1x256xf32>
    %217 = arith.addf %214, %216 : vector<1x256xf32>
    %218 = vector.broadcast %73 : f32 to vector<1x256xf32>
    %219 = arith.addf %217, %218 : vector<1x256xf32>
    %220 = vector.broadcast %42 : f32 to vector<1x256xf32>
    %221 = arith.mulf %220, %103 : vector<1x256xf32>
    %222 = vector.broadcast %46 : f32 to vector<1x256xf32>
    %223 = arith.mulf %222, %116 : vector<1x256xf32>
    %224 = arith.addf %221, %223 : vector<1x256xf32>
    %225 = vector.broadcast %50 : f32 to vector<1x256xf32>
    %226 = arith.mulf %225, %129 : vector<1x256xf32>
    %227 = arith.addf %224, %226 : vector<1x256xf32>
    %228 = vector.broadcast %54 : f32 to vector<1x256xf32>
    %229 = arith.mulf %228, %142 : vector<1x256xf32>
    %230 = arith.addf %227, %229 : vector<1x256xf32>
    %231 = vector.broadcast %58 : f32 to vector<1x256xf32>
    %232 = arith.mulf %231, %155 : vector<1x256xf32>
    %233 = arith.addf %230, %232 : vector<1x256xf32>
    %234 = vector.broadcast %62 : f32 to vector<1x256xf32>
    %235 = arith.mulf %234, %168 : vector<1x256xf32>
    %236 = arith.addf %233, %235 : vector<1x256xf32>
    %237 = vector.broadcast %66 : f32 to vector<1x256xf32>
    %238 = arith.mulf %237, %181 : vector<1x256xf32>
    %239 = arith.addf %236, %238 : vector<1x256xf32>
    %240 = vector.broadcast %70 : f32 to vector<1x256xf32>
    %241 = arith.mulf %240, %194 : vector<1x256xf32>
    %242 = arith.addf %239, %241 : vector<1x256xf32>
    %243 = vector.broadcast %74 : f32 to vector<1x256xf32>
    %244 = arith.addf %242, %243 : vector<1x256xf32>
    %245 = vector.broadcast %43 : f32 to vector<1x256xf32>
    %246 = arith.mulf %245, %103 : vector<1x256xf32>
    %247 = vector.broadcast %47 : f32 to vector<1x256xf32>
    %248 = arith.mulf %247, %116 : vector<1x256xf32>
    %249 = arith.addf %246, %248 : vector<1x256xf32>
    %250 = vector.broadcast %51 : f32 to vector<1x256xf32>
    %251 = arith.mulf %250, %129 : vector<1x256xf32>
    %252 = arith.addf %249, %251 : vector<1x256xf32>
    %253 = vector.broadcast %55 : f32 to vector<1x256xf32>
    %254 = arith.mulf %253, %142 : vector<1x256xf32>
    %255 = arith.addf %252, %254 : vector<1x256xf32>
    %256 = vector.broadcast %59 : f32 to vector<1x256xf32>
    %257 = arith.mulf %256, %155 : vector<1x256xf32>
    %258 = arith.addf %255, %257 : vector<1x256xf32>
    %259 = vector.broadcast %63 : f32 to vector<1x256xf32>
    %260 = arith.mulf %259, %168 : vector<1x256xf32>
    %261 = arith.addf %258, %260 : vector<1x256xf32>
    %262 = vector.broadcast %67 : f32 to vector<1x256xf32>
    %263 = arith.mulf %262, %181 : vector<1x256xf32>
    %264 = arith.addf %261, %263 : vector<1x256xf32>
    %265 = vector.broadcast %71 : f32 to vector<1x256xf32>
    %266 = arith.mulf %265, %194 : vector<1x256xf32>
    %267 = arith.addf %264, %266 : vector<1x256xf32>
    %268 = vector.broadcast %75 : f32 to vector<1x256xf32>
    %269 = arith.addf %267, %268 : vector<1x256xf32>
    %270 = vector.broadcast %44 : f32 to vector<1x256xf32>
    %271 = arith.mulf %270, %103 : vector<1x256xf32>
    %272 = vector.broadcast %48 : f32 to vector<1x256xf32>
    %273 = arith.mulf %272, %116 : vector<1x256xf32>
    %274 = arith.addf %271, %273 : vector<1x256xf32>
    %275 = vector.broadcast %52 : f32 to vector<1x256xf32>
    %276 = arith.mulf %275, %129 : vector<1x256xf32>
    %277 = arith.addf %274, %276 : vector<1x256xf32>
    %278 = vector.broadcast %56 : f32 to vector<1x256xf32>
    %279 = arith.mulf %278, %142 : vector<1x256xf32>
    %280 = arith.addf %277, %279 : vector<1x256xf32>
    %281 = vector.broadcast %60 : f32 to vector<1x256xf32>
    %282 = arith.mulf %281, %155 : vector<1x256xf32>
    %283 = arith.addf %280, %282 : vector<1x256xf32>
    %284 = vector.broadcast %64 : f32 to vector<1x256xf32>
    %285 = arith.mulf %284, %168 : vector<1x256xf32>
    %286 = arith.addf %283, %285 : vector<1x256xf32>
    %287 = vector.broadcast %68 : f32 to vector<1x256xf32>
    %288 = arith.mulf %287, %181 : vector<1x256xf32>
    %289 = arith.addf %286, %288 : vector<1x256xf32>
    %290 = vector.broadcast %72 : f32 to vector<1x256xf32>
    %291 = arith.mulf %290, %194 : vector<1x256xf32>
    %292 = arith.addf %289, %291 : vector<1x256xf32>
    %293 = vector.broadcast %76 : f32 to vector<1x256xf32>
    %294 = arith.addf %292, %293 : vector<1x256xf32>
    %295 = vector.broadcast %77 : f32 to vector<1x256xf32>
    %296 = arith.mulf %295, %219 : vector<1x256xf32>
    %297 = vector.broadcast %79 : f32 to vector<1x256xf32>
    %298 = arith.mulf %297, %244 : vector<1x256xf32>
    %299 = arith.addf %296, %298 : vector<1x256xf32>
    %300 = vector.broadcast %81 : f32 to vector<1x256xf32>
    %301 = arith.mulf %300, %269 : vector<1x256xf32>
    %302 = arith.addf %299, %301 : vector<1x256xf32>
    %303 = vector.broadcast %83 : f32 to vector<1x256xf32>
    %304 = arith.mulf %303, %294 : vector<1x256xf32>
    %305 = arith.addf %302, %304 : vector<1x256xf32>
    %306 = vector.broadcast %85 : f32 to vector<1x256xf32>
    %307 = arith.addf %305, %306 : vector<1x256xf32>
    %308 = vector.broadcast %78 : f32 to vector<1x256xf32>
    %309 = arith.mulf %308, %219 : vector<1x256xf32>
    %310 = vector.broadcast %80 : f32 to vector<1x256xf32>
    %311 = arith.mulf %310, %244 : vector<1x256xf32>
    %312 = arith.addf %309, %311 : vector<1x256xf32>
    %313 = vector.broadcast %82 : f32 to vector<1x256xf32>
    %314 = arith.mulf %313, %269 : vector<1x256xf32>
    %315 = arith.addf %312, %314 : vector<1x256xf32>
    %316 = vector.broadcast %84 : f32 to vector<1x256xf32>
    %317 = arith.mulf %316, %294 : vector<1x256xf32>
    %318 = arith.addf %315, %317 : vector<1x256xf32>
    %319 = vector.broadcast %86 : f32 to vector<1x256xf32>
    %320 = arith.addf %318, %319 : vector<1x256xf32>
    %321 = vector.extract_strided_slice %0 {offsets = [4, 0], sizes = [1, 256], strides = [1, 1]} : vector<8x256xf32> to vector<1x256xf32>
    %322 = vector.extract_strided_slice %0 {offsets = [5, 0], sizes = [1, 256], strides = [1, 1]} : vector<8x256xf32> to vector<1x256xf32>
    %323 = vector.extract_strided_slice %0 {offsets = [6, 0], sizes = [1, 256], strides = [1, 1]} : vector<8x256xf32> to vector<1x256xf32>
    %324 = vector.extract_strided_slice %0 {offsets = [7, 0], sizes = [1, 256], strides = [1, 1]} : vector<8x256xf32> to vector<1x256xf32>
    %325 = vector.broadcast %1 : f32 to vector<1x256xf32>
    %326 = arith.mulf %325, %321 : vector<1x256xf32>
    %327 = vector.broadcast %9 : f32 to vector<1x256xf32>
    %328 = arith.mulf %327, %322 : vector<1x256xf32>
    %329 = arith.addf %326, %328 : vector<1x256xf32>
    %330 = vector.broadcast %17 : f32 to vector<1x256xf32>
    %331 = arith.mulf %330, %323 : vector<1x256xf32>
    %332 = arith.addf %329, %331 : vector<1x256xf32>
    %333 = vector.broadcast %25 : f32 to vector<1x256xf32>
    %334 = arith.mulf %333, %324 : vector<1x256xf32>
    %335 = arith.addf %332, %334 : vector<1x256xf32>
    %336 = vector.broadcast %33 : f32 to vector<1x256xf32>
    %337 = arith.addf %335, %336 : vector<1x256xf32>
    %338 = vector.broadcast %2 : f32 to vector<1x256xf32>
    %339 = arith.mulf %338, %321 : vector<1x256xf32>
    %340 = vector.broadcast %10 : f32 to vector<1x256xf32>
    %341 = arith.mulf %340, %322 : vector<1x256xf32>
    %342 = arith.addf %339, %341 : vector<1x256xf32>
    %343 = vector.broadcast %18 : f32 to vector<1x256xf32>
    %344 = arith.mulf %343, %323 : vector<1x256xf32>
    %345 = arith.addf %342, %344 : vector<1x256xf32>
    %346 = vector.broadcast %26 : f32 to vector<1x256xf32>
    %347 = arith.mulf %346, %324 : vector<1x256xf32>
    %348 = arith.addf %345, %347 : vector<1x256xf32>
    %349 = vector.broadcast %34 : f32 to vector<1x256xf32>
    %350 = arith.addf %348, %349 : vector<1x256xf32>
    %351 = vector.broadcast %3 : f32 to vector<1x256xf32>
    %352 = arith.mulf %351, %321 : vector<1x256xf32>
    %353 = vector.broadcast %11 : f32 to vector<1x256xf32>
    %354 = arith.mulf %353, %322 : vector<1x256xf32>
    %355 = arith.addf %352, %354 : vector<1x256xf32>
    %356 = vector.broadcast %19 : f32 to vector<1x256xf32>
    %357 = arith.mulf %356, %323 : vector<1x256xf32>
    %358 = arith.addf %355, %357 : vector<1x256xf32>
    %359 = vector.broadcast %27 : f32 to vector<1x256xf32>
    %360 = arith.mulf %359, %324 : vector<1x256xf32>
    %361 = arith.addf %358, %360 : vector<1x256xf32>
    %362 = vector.broadcast %35 : f32 to vector<1x256xf32>
    %363 = arith.addf %361, %362 : vector<1x256xf32>
    %364 = vector.broadcast %4 : f32 to vector<1x256xf32>
    %365 = arith.mulf %364, %321 : vector<1x256xf32>
    %366 = vector.broadcast %12 : f32 to vector<1x256xf32>
    %367 = arith.mulf %366, %322 : vector<1x256xf32>
    %368 = arith.addf %365, %367 : vector<1x256xf32>
    %369 = vector.broadcast %20 : f32 to vector<1x256xf32>
    %370 = arith.mulf %369, %323 : vector<1x256xf32>
    %371 = arith.addf %368, %370 : vector<1x256xf32>
    %372 = vector.broadcast %28 : f32 to vector<1x256xf32>
    %373 = arith.mulf %372, %324 : vector<1x256xf32>
    %374 = arith.addf %371, %373 : vector<1x256xf32>
    %375 = vector.broadcast %36 : f32 to vector<1x256xf32>
    %376 = arith.addf %374, %375 : vector<1x256xf32>
    %377 = vector.broadcast %5 : f32 to vector<1x256xf32>
    %378 = arith.mulf %377, %321 : vector<1x256xf32>
    %379 = vector.broadcast %13 : f32 to vector<1x256xf32>
    %380 = arith.mulf %379, %322 : vector<1x256xf32>
    %381 = arith.addf %378, %380 : vector<1x256xf32>
    %382 = vector.broadcast %21 : f32 to vector<1x256xf32>
    %383 = arith.mulf %382, %323 : vector<1x256xf32>
    %384 = arith.addf %381, %383 : vector<1x256xf32>
    %385 = vector.broadcast %29 : f32 to vector<1x256xf32>
    %386 = arith.mulf %385, %324 : vector<1x256xf32>
    %387 = arith.addf %384, %386 : vector<1x256xf32>
    %388 = vector.broadcast %37 : f32 to vector<1x256xf32>
    %389 = arith.addf %387, %388 : vector<1x256xf32>
    %390 = vector.broadcast %6 : f32 to vector<1x256xf32>
    %391 = arith.mulf %390, %321 : vector<1x256xf32>
    %392 = vector.broadcast %14 : f32 to vector<1x256xf32>
    %393 = arith.mulf %392, %322 : vector<1x256xf32>
    %394 = arith.addf %391, %393 : vector<1x256xf32>
    %395 = vector.broadcast %22 : f32 to vector<1x256xf32>
    %396 = arith.mulf %395, %323 : vector<1x256xf32>
    %397 = arith.addf %394, %396 : vector<1x256xf32>
    %398 = vector.broadcast %30 : f32 to vector<1x256xf32>
    %399 = arith.mulf %398, %324 : vector<1x256xf32>
    %400 = arith.addf %397, %399 : vector<1x256xf32>
    %401 = vector.broadcast %38 : f32 to vector<1x256xf32>
    %402 = arith.addf %400, %401 : vector<1x256xf32>
    %403 = vector.broadcast %7 : f32 to vector<1x256xf32>
    %404 = arith.mulf %403, %321 : vector<1x256xf32>
    %405 = vector.broadcast %15 : f32 to vector<1x256xf32>
    %406 = arith.mulf %405, %322 : vector<1x256xf32>
    %407 = arith.addf %404, %406 : vector<1x256xf32>
    %408 = vector.broadcast %23 : f32 to vector<1x256xf32>
    %409 = arith.mulf %408, %323 : vector<1x256xf32>
    %410 = arith.addf %407, %409 : vector<1x256xf32>
    %411 = vector.broadcast %31 : f32 to vector<1x256xf32>
    %412 = arith.mulf %411, %324 : vector<1x256xf32>
    %413 = arith.addf %410, %412 : vector<1x256xf32>
    %414 = vector.broadcast %39 : f32 to vector<1x256xf32>
    %415 = arith.addf %413, %414 : vector<1x256xf32>
    %416 = vector.broadcast %8 : f32 to vector<1x256xf32>
    %417 = arith.mulf %416, %321 : vector<1x256xf32>
    %418 = vector.broadcast %16 : f32 to vector<1x256xf32>
    %419 = arith.mulf %418, %322 : vector<1x256xf32>
    %420 = arith.addf %417, %419 : vector<1x256xf32>
    %421 = vector.broadcast %24 : f32 to vector<1x256xf32>
    %422 = arith.mulf %421, %323 : vector<1x256xf32>
    %423 = arith.addf %420, %422 : vector<1x256xf32>
    %424 = vector.broadcast %32 : f32 to vector<1x256xf32>
    %425 = arith.mulf %424, %324 : vector<1x256xf32>
    %426 = arith.addf %423, %425 : vector<1x256xf32>
    %427 = vector.broadcast %40 : f32 to vector<1x256xf32>
    %428 = arith.addf %426, %427 : vector<1x256xf32>
    %429 = vector.broadcast %41 : f32 to vector<1x256xf32>
    %430 = arith.mulf %429, %337 : vector<1x256xf32>
    %431 = vector.broadcast %45 : f32 to vector<1x256xf32>
    %432 = arith.mulf %431, %350 : vector<1x256xf32>
    %433 = arith.addf %430, %432 : vector<1x256xf32>
    %434 = vector.broadcast %49 : f32 to vector<1x256xf32>
    %435 = arith.mulf %434, %363 : vector<1x256xf32>
    %436 = arith.addf %433, %435 : vector<1x256xf32>
    %437 = vector.broadcast %53 : f32 to vector<1x256xf32>
    %438 = arith.mulf %437, %376 : vector<1x256xf32>
    %439 = arith.addf %436, %438 : vector<1x256xf32>
    %440 = vector.broadcast %57 : f32 to vector<1x256xf32>
    %441 = arith.mulf %440, %389 : vector<1x256xf32>
    %442 = arith.addf %439, %441 : vector<1x256xf32>
    %443 = vector.broadcast %61 : f32 to vector<1x256xf32>
    %444 = arith.mulf %443, %402 : vector<1x256xf32>
    %445 = arith.addf %442, %444 : vector<1x256xf32>
    %446 = vector.broadcast %65 : f32 to vector<1x256xf32>
    %447 = arith.mulf %446, %415 : vector<1x256xf32>
    %448 = arith.addf %445, %447 : vector<1x256xf32>
    %449 = vector.broadcast %69 : f32 to vector<1x256xf32>
    %450 = arith.mulf %449, %428 : vector<1x256xf32>
    %451 = arith.addf %448, %450 : vector<1x256xf32>
    %452 = vector.broadcast %73 : f32 to vector<1x256xf32>
    %453 = arith.addf %451, %452 : vector<1x256xf32>
    %454 = vector.broadcast %42 : f32 to vector<1x256xf32>
    %455 = arith.mulf %454, %337 : vector<1x256xf32>
    %456 = vector.broadcast %46 : f32 to vector<1x256xf32>
    %457 = arith.mulf %456, %350 : vector<1x256xf32>
    %458 = arith.addf %455, %457 : vector<1x256xf32>
    %459 = vector.broadcast %50 : f32 to vector<1x256xf32>
    %460 = arith.mulf %459, %363 : vector<1x256xf32>
    %461 = arith.addf %458, %460 : vector<1x256xf32>
    %462 = vector.broadcast %54 : f32 to vector<1x256xf32>
    %463 = arith.mulf %462, %376 : vector<1x256xf32>
    %464 = arith.addf %461, %463 : vector<1x256xf32>
    %465 = vector.broadcast %58 : f32 to vector<1x256xf32>
    %466 = arith.mulf %465, %389 : vector<1x256xf32>
    %467 = arith.addf %464, %466 : vector<1x256xf32>
    %468 = vector.broadcast %62 : f32 to vector<1x256xf32>
    %469 = arith.mulf %468, %402 : vector<1x256xf32>
    %470 = arith.addf %467, %469 : vector<1x256xf32>
    %471 = vector.broadcast %66 : f32 to vector<1x256xf32>
    %472 = arith.mulf %471, %415 : vector<1x256xf32>
    %473 = arith.addf %470, %472 : vector<1x256xf32>
    %474 = vector.broadcast %70 : f32 to vector<1x256xf32>
    %475 = arith.mulf %474, %428 : vector<1x256xf32>
    %476 = arith.addf %473, %475 : vector<1x256xf32>
    %477 = vector.broadcast %74 : f32 to vector<1x256xf32>
    %478 = arith.addf %476, %477 : vector<1x256xf32>
    %479 = vector.broadcast %43 : f32 to vector<1x256xf32>
    %480 = arith.mulf %479, %337 : vector<1x256xf32>
    %481 = vector.broadcast %47 : f32 to vector<1x256xf32>
    %482 = arith.mulf %481, %350 : vector<1x256xf32>
    %483 = arith.addf %480, %482 : vector<1x256xf32>
    %484 = vector.broadcast %51 : f32 to vector<1x256xf32>
    %485 = arith.mulf %484, %363 : vector<1x256xf32>
    %486 = arith.addf %483, %485 : vector<1x256xf32>
    %487 = vector.broadcast %55 : f32 to vector<1x256xf32>
    %488 = arith.mulf %487, %376 : vector<1x256xf32>
    %489 = arith.addf %486, %488 : vector<1x256xf32>
    %490 = vector.broadcast %59 : f32 to vector<1x256xf32>
    %491 = arith.mulf %490, %389 : vector<1x256xf32>
    %492 = arith.addf %489, %491 : vector<1x256xf32>
    %493 = vector.broadcast %63 : f32 to vector<1x256xf32>
    %494 = arith.mulf %493, %402 : vector<1x256xf32>
    %495 = arith.addf %492, %494 : vector<1x256xf32>
    %496 = vector.broadcast %67 : f32 to vector<1x256xf32>
    %497 = arith.mulf %496, %415 : vector<1x256xf32>
    %498 = arith.addf %495, %497 : vector<1x256xf32>
    %499 = vector.broadcast %71 : f32 to vector<1x256xf32>
    %500 = arith.mulf %499, %428 : vector<1x256xf32>
    %501 = arith.addf %498, %500 : vector<1x256xf32>
    %502 = vector.broadcast %75 : f32 to vector<1x256xf32>
    %503 = arith.addf %501, %502 : vector<1x256xf32>
    %504 = vector.broadcast %44 : f32 to vector<1x256xf32>
    %505 = arith.mulf %504, %337 : vector<1x256xf32>
    %506 = vector.broadcast %48 : f32 to vector<1x256xf32>
    %507 = arith.mulf %506, %350 : vector<1x256xf32>
    %508 = arith.addf %505, %507 : vector<1x256xf32>
    %509 = vector.broadcast %52 : f32 to vector<1x256xf32>
    %510 = arith.mulf %509, %363 : vector<1x256xf32>
    %511 = arith.addf %508, %510 : vector<1x256xf32>
    %512 = vector.broadcast %56 : f32 to vector<1x256xf32>
    %513 = arith.mulf %512, %376 : vector<1x256xf32>
    %514 = arith.addf %511, %513 : vector<1x256xf32>
    %515 = vector.broadcast %60 : f32 to vector<1x256xf32>
    %516 = arith.mulf %515, %389 : vector<1x256xf32>
    %517 = arith.addf %514, %516 : vector<1x256xf32>
    %518 = vector.broadcast %64 : f32 to vector<1x256xf32>
    %519 = arith.mulf %518, %402 : vector<1x256xf32>
    %520 = arith.addf %517, %519 : vector<1x256xf32>
    %521 = vector.broadcast %68 : f32 to vector<1x256xf32>
    %522 = arith.mulf %521, %415 : vector<1x256xf32>
    %523 = arith.addf %520, %522 : vector<1x256xf32>
    %524 = vector.broadcast %72 : f32 to vector<1x256xf32>
    %525 = arith.mulf %524, %428 : vector<1x256xf32>
    %526 = arith.addf %523, %525 : vector<1x256xf32>
    %527 = vector.broadcast %76 : f32 to vector<1x256xf32>
    %528 = arith.addf %526, %527 : vector<1x256xf32>
    %529 = vector.broadcast %77 : f32 to vector<1x256xf32>
    %530 = arith.mulf %529, %453 : vector<1x256xf32>
    %531 = vector.broadcast %79 : f32 to vector<1x256xf32>
    %532 = arith.mulf %531, %478 : vector<1x256xf32>
    %533 = arith.addf %530, %532 : vector<1x256xf32>
    %534 = vector.broadcast %81 : f32 to vector<1x256xf32>
    %535 = arith.mulf %534, %503 : vector<1x256xf32>
    %536 = arith.addf %533, %535 : vector<1x256xf32>
    %537 = vector.broadcast %83 : f32 to vector<1x256xf32>
    %538 = arith.mulf %537, %528 : vector<1x256xf32>
    %539 = arith.addf %536, %538 : vector<1x256xf32>
    %540 = vector.broadcast %85 : f32 to vector<1x256xf32>
    %541 = arith.addf %539, %540 : vector<1x256xf32>
    %542 = vector.broadcast %78 : f32 to vector<1x256xf32>
    %543 = arith.mulf %542, %453 : vector<1x256xf32>
    %544 = vector.broadcast %80 : f32 to vector<1x256xf32>
    %545 = arith.mulf %544, %478 : vector<1x256xf32>
    %546 = arith.addf %543, %545 : vector<1x256xf32>
    %547 = vector.broadcast %82 : f32 to vector<1x256xf32>
    %548 = arith.mulf %547, %503 : vector<1x256xf32>
    %549 = arith.addf %546, %548 : vector<1x256xf32>
    %550 = vector.broadcast %84 : f32 to vector<1x256xf32>
    %551 = arith.mulf %550, %528 : vector<1x256xf32>
    %552 = arith.addf %549, %551 : vector<1x256xf32>
    %553 = vector.broadcast %86 : f32 to vector<1x256xf32>
    %554 = arith.addf %552, %553 : vector<1x256xf32>
    %555 = tpu.concatenate %307, %320, %541, %554 in 0 : vector<1x256xf32>, vector<1x256xf32>, vector<1x256xf32>, vector<1x256xf32> -> vector<4x256xf32>
    %556 = tpu.iota {dimensions = array<i32: 0>} : vector<4x256xi32>
    %557 = tpu.iota {dimensions = array<i32: 1>} : vector<4x256xi32>
    %c4_i32 = arith.constant 4 : i32
    %558 = vector.broadcast %c4_i32 : i32 to vector<4x256xi32>
    %559 = arith.muli %558, %556 : vector<4x256xi32>
    %c0_i32 = arith.constant 0 : i32
    %560 = vector.broadcast %c0_i32 : i32 to vector<4x256xi32>
    %561 = arith.addi %560, %559 : vector<4x256xi32>
    %562 = arith.cmpi eq, %557, %561 : vector<4x256xi32>
    %cst = arith.constant 1.000000e+00 : f32
    %cst_2 = arith.constant 0.000000e+00 : f32
    %563 = vector.broadcast %cst : f32 to vector<4x256xf32>
    %564 = vector.broadcast %cst_2 : f32 to vector<4x256xf32>
    %565 = arith.select %562, %563, %564 : vector<4x256xi1>, vector<4x256xf32>
    %c4_i32_3 = arith.constant 4 : i32
    %566 = vector.broadcast %c4_i32_3 : i32 to vector<4x256xi32>
    %567 = arith.muli %566, %556 : vector<4x256xi32>
    %c64_i32 = arith.constant 64 : i32
    %568 = vector.broadcast %c64_i32 : i32 to vector<4x256xi32>
    %569 = arith.addi %568, %567 : vector<4x256xi32>
    %570 = arith.cmpi eq, %557, %569 : vector<4x256xi32>
    %cst_4 = arith.constant 1.000000e+00 : f32
    %cst_5 = arith.constant 0.000000e+00 : f32
    %571 = vector.broadcast %cst_4 : f32 to vector<4x256xf32>
    %572 = vector.broadcast %cst_5 : f32 to vector<4x256xf32>
    %573 = arith.select %570, %571, %572 : vector<4x256xi1>, vector<4x256xf32>
    %c4_i32_6 = arith.constant 4 : i32
    %574 = vector.broadcast %c4_i32_6 : i32 to vector<4x256xi32>
    %575 = arith.muli %574, %556 : vector<4x256xi32>
    %c128_i32 = arith.constant 128 : i32
    %576 = vector.broadcast %c128_i32 : i32 to vector<4x256xi32>
    %577 = arith.addi %576, %575 : vector<4x256xi32>
    %578 = arith.cmpi eq, %557, %577 : vector<4x256xi32>
    %cst_7 = arith.constant 1.000000e+00 : f32
    %cst_8 = arith.constant 0.000000e+00 : f32
    %579 = vector.broadcast %cst_7 : f32 to vector<4x256xf32>
    %580 = vector.broadcast %cst_8 : f32 to vector<4x256xf32>
    %581 = arith.select %578, %579, %580 : vector<4x256xi1>, vector<4x256xf32>
    %c4_i32_9 = arith.constant 4 : i32
    %582 = vector.broadcast %c4_i32_9 : i32 to vector<4x256xi32>
    %583 = arith.muli %582, %556 : vector<4x256xi32>
    %c192_i32 = arith.constant 192 : i32
    %584 = vector.broadcast %c192_i32 : i32 to vector<4x256xi32>
    %585 = arith.addi %584, %583 : vector<4x256xi32>
    %586 = arith.cmpi eq, %557, %585 : vector<4x256xi32>
    %cst_10 = arith.constant 1.000000e+00 : f32
    %cst_11 = arith.constant 0.000000e+00 : f32
    %587 = vector.broadcast %cst_10 : f32 to vector<4x256xf32>
    %588 = vector.broadcast %cst_11 : f32 to vector<4x256xf32>
    %589 = arith.select %586, %587, %588 : vector<4x256xi1>, vector<4x256xf32>
    %590 = tpu.concatenate %565, %573, %581, %589 in 0 : vector<4x256xf32>, vector<4x256xf32>, vector<4x256xf32>, vector<4x256xf32> -> vector<16x256xf32>
    %591 = vector.shape_cast %555 : vector<4x256xf32> to vector<4x1x256xf32>
    %592 = vector.shape_cast %590 : vector<16x256xf32> to vector<1x16x256xf32>
    %593 = vector.broadcast %591 : vector<4x1x256xf32> to vector<4x16x256xf32>
    %594 = vector.broadcast %592 : vector<1x16x256xf32> to vector<4x16x256xf32>
    %595 = arith.mulf %593, %594 : vector<4x16x256xf32>
    %cst_12 = arith.constant dense<0.000000e+00> : vector<4x16xf32>
    %596 = vector.multi_reduction <add>, %595, %cst_12 [2] : vector<4x16x256xf32> to vector<4x16xf32>
    %c0_13 = arith.constant 0 : index
    %c0_14 = arith.constant 0 : index
    %597 = vector.load %arg2[%c0_13, %c0_14] : memref<4x16xf32, #tpu.memory_space<vmem>>, vector<4x16xf32>
    tpu.vector_store %arg2[%c0_13, %c0_14], %596 {strides = array<i32>} : memref<4x16xf32, #tpu.memory_space<vmem>>, vector<4x16xf32>,
    return
  }
}

</mosaic_0001>

<llo_original>
// kernel: small_conv_net_forward.1
$region0: #{small_conv_net_forward.1}
  #allocation0 [shape = 'u32[]', space=smem, size = 0x4, offset = 0x4, fixed_abs, tag = 'smem constant byte address 0x4 - core index']
  #allocation1 [shape = 'u32[144,128]{1,0:T(1,128)}', space=vmem, size = 0x12000, scoped, tag = 'internal scratch']
  %s0 = inlined_call_operand.vmem [shape: f32[86], index: 0, kind: input, shape index: {}]
  %s1 = inlined_call_operand.vmem [shape: f32[8,256], index: 1, kind: input, shape index: {}]
  %s2 = inlined_call_operand.vmem [shape: f32[4,16], index: 2, kind: output, shape index: {}]
  %s3 = sld [smem:[#allocation0]]
  $region22: #{small_conv_net_forward.1} parent=0
    _
  %s5 = ssub.s32 1, %s3
  %s6 = scalar_select 0, %s5, %s3
  $region1: #{small_conv_net_forward.1} parent=0
    #allocation2 [shape = 'u8[512]{0}', space=smem, size = 0x200, scoped, tag = 'input window, operand 0, single buffered']
    #allocation3 [shape = 's32[1]{0}', space=sflag, size = 0x4, scoped, tag = 'scoped memory for small_conv_net_forward.1']
    %7 = vsyncpa [#allocation3], 0
    // Predicated region
    $region2: #{small_conv_net_forward.1} parent=1 // pred_check
      _
    $region3: #{small_conv_net_forward.1} parent=1 // pred_check_branch
      %9 = sbr.rel (0) target = $region5
    $region4: #{small_conv_net_forward.1} parent=1 // pred_region
      %s11 = ssub.s32 16, 16
      %12 = vsyncadd [#allocation3], %s11
      %s14 = sshll.u32 %s0, 4
      %s15 = int_to_ptr.vmem [resolvable:$true] %s14
      %17 = dma.vmem_to_smem %s15, 16, [#allocation2], [#allocation3]
    $region5: #{small_conv_net_forward.1} parent=1 // pred_fallthru
      _
    // Predicated region
    $region6: #{small_conv_net_forward.1} parent=1 // pred_check
      _
    $region7: #{small_conv_net_forward.1} parent=1 // pred_check_branch
      %19 = sbr.rel (0) target = $region9
    $region8: #{small_conv_net_forward.1} parent=1 // pred_region
      _
    $region9: #{small_conv_net_forward.1} parent=1 // pred_fallthru
      _
    // Predicated region
    $region10: #{small_conv_net_forward.1} parent=1 // pred_check
      _
    $region11: #{small_conv_net_forward.1} parent=1 // pred_check_branch
      %21 = sbr.rel (0) target = $region13
    $region12: #{small_conv_net_forward.1} parent=1 // pred_region
      %22 = dma.done [#allocation3], 16
    $region13: #{small_conv_net_forward.1} parent=1 // pred_fallthru
      _
    %23 = sfence
    %v24 = vld [vmem:[%s1] sm:$0xff]
    %v25 = vld [vmem:[%s1 + $0x8] sm:$0xff]
    %s26 = sld [smem:[#allocation2]]
    %s27 = sld [smem:[#allocation2 + $0x1]]
    %s28 = sld [smem:[#allocation2 + $0x2]]
    %s29 = sld [smem:[#allocation2 + $0x3]]
    %s30 = sld [smem:[#allocation2 + $0x4]]
    %s31 = sld [smem:[#allocation2 + $0x5]]
    %s32 = sld [smem:[#allocation2 + $0x6]]
    %s33 = sld [smem:[#allocation2 + $0x7]]
    %s34 = sld [smem:[#allocation2 + $0x8]]
    %s35 = sld [smem:[#allocation2 + $0x9]]
    %s36 = sld [smem:[#allocation2 + $0xa]]
    %s37 = sld [smem:[#allocation2 + $0xb]]
    %s38 = sld [smem:[#allocation2 + $0xc]]
    %s39 = sld [smem:[#allocation2 + $0xd]]
    %s40 = sld [smem:[#allocation2 + $0xe]]
    %s41 = sld [smem:[#allocation2 + $0xf]]
    %s42 = sld [smem:[#allocation2 + $0x10]]
    %s43 = sld [smem:[#allocation2 + $0x11]]
    %s44 = sld [smem:[#allocation2 + $0x12]]
    %s45 = sld [smem:[#allocation2 + $0x13]]
    %s46 = sld [smem:[#allocation2 + $0x14]]
    %s47 = sld [smem:[#allocation2 + $0x15]]
    %s48 = sld [smem:[#allocation2 + $0x16]]
    %s49 = sld [smem:[#allocation2 + $0x17]]
    %s50 = sld [smem:[#allocation2 + $0x18]]
    %s51 = sld [smem:[#allocation2 + $0x19]]
    %s52 = sld [smem:[#allocation2 + $0x1a]]
    %s53 = sld [smem:[#allocation2 + $0x1b]]
    %s54 = sld [smem:[#allocation2 + $0x1c]]
    %s55 = sld [smem:[#allocation2 + $0x1d]]
    %s56 = sld [smem:[#allocation2 + $0x1e]]
    %s57 = sld [smem:[#allocation2 + $0x1f]]
    %s58 = sld [smem:[#allocation2 + $0x20]]
    %s59 = sld [smem:[#allocation2 + $0x21]]
    %s60 = sld [smem:[#allocation2 + $0x22]]
    %s61 = sld [smem:[#allocation2 + $0x23]]
    %s62 = sld [smem:[#allocation2 + $0x24]]
    %s63 = sld [smem:[#allocation2 + $0x25]]
    %s64 = sld [smem:[#allocation2 + $0x26]]
    %s65 = sld [smem:[#allocation2 + $0x27]]
    %s66 = sld [smem:[#allocation2 + $0x28]]
    %s67 = sld [smem:[#allocation2 + $0x29]]
    %s68 = sld [smem:[#allocation2 + $0x2a]]
    %s69 = sld [smem:[#allocation2 + $0x2b]]
    %s70 = sld [smem:[#allocation2 + $0x2c]]
    %s71 = sld [smem:[#allocation2 + $0x2d]]
    %s72 = sld [smem:[#allocation2 + $0x2e]]
    %s73 = sld [smem:[#allocation2 + $0x2f]]
    %s74 = sld [smem:[#allocation2 + $0x30]]
    %s75 = sld [smem:[#allocation2 + $0x31]]
    %s76 = sld [smem:[#allocation2 + $0x32]]
    %s77 = sld [smem:[#allocation2 + $0x33]]
    %s78 = sld [smem:[#allocation2 + $0x34]]
    %s79 = sld [smem:[#allocation2 + $0x35]]
    %s80 = sld [smem:[#allocation2 + $0x36]]
    %s81 = sld [smem:[#allocation2 + $0x37]]
    %s82 = sld [smem:[#allocation2 + $0x38]]
    %s83 = sld [smem:[#allocation2 + $0x39]]
    %s84 = sld [smem:[#allocation2 + $0x3a]]
    %s85 = sld [smem:[#allocation2 + $0x3b]]
    %s86 = sld [smem:[#allocation2 + $0x3c]]
    %s87 = sld [smem:[#allocation2 + $0x3d]]
    %s88 = sld [smem:[#allocation2 + $0x3e]]
    %s89 = sld [smem:[#allocation2 + $0x3f]]
    %s90 = sld [smem:[#allocation2 + $0x40]]
    %s91 = sld [smem:[#allocation2 + $0x41]]
    %s92 = sld [smem:[#allocation2 + $0x42]]
    %s93 = sld [smem:[#allocation2 + $0x43]]
    %s94 = sld [smem:[#allocation2 + $0x44]]
    %s95 = sld [smem:[#allocation2 + $0x45]]
    %s96 = sld [smem:[#allocation2 + $0x46]]
    %s97 = sld [smem:[#allocation2 + $0x47]]
    %s98 = sld [smem:[#allocation2 + $0x48]]
    %s99 = sld [smem:[#allocation2 + $0x49]]
    %s100 = sld [smem:[#allocation2 + $0x4a]]
    %s101 = sld [smem:[#allocation2 + $0x4b]]
    %s102 = sld [smem:[#allocation2 + $0x4c]]
    %s103 = sld [smem:[#allocation2 + $0x4d]]
    %s104 = sld [smem:[#allocation2 + $0x4e]]
    %s105 = sld [smem:[#allocation2 + $0x4f]]
    %s106 = sld [smem:[#allocation2 + $0x50]]
    %s107 = sld [smem:[#allocation2 + $0x51]]
    %s108 = sld [smem:[#allocation2 + $0x52]]
    %s109 = sld [smem:[#allocation2 + $0x53]]
    %s110 = sld [smem:[#allocation2 + $0x54]]
    %s111 = sld [smem:[#allocation2 + $0x55]]
    %v112 = vstv %s26
    %v113 = vmul.f32 %v112, %v24
    %v114 = vmul.f32 %v112, %v25
    %v115 = vstv %s34
    %v116 = vmul.f32 %v115, %v24
    %v117 = vmul.f32 %v115, %v25
    %v120 = vrot.slane %v116, 1
    %v121 = vrot.slane %v117, 1
    %v124 = vadd.f32 %v113, %v120
    %v125 = vadd.f32 %v114, %v121
    %v126 = vstv %s42
    %v127 = vmul.f32 %v126, %v24
    %v128 = vmul.f32 %v126, %v25
    %v131 = vrot.slane %v127, 2
    %v132 = vrot.slane %v128, 2
    %v135 = vadd.f32 %v124, %v131
    %v136 = vadd.f32 %v125, %v132
    %v137 = vstv %s50
    %v138 = vmul.f32 %v137, %v24
    %v139 = vmul.f32 %v137, %v25
    %v142 = vrot.slane %v138, 3
    %v143 = vrot.slane %v139, 3
    %v146 = vadd.f32 %v135, %v142
    %v147 = vadd.f32 %v136, %v143
    %v148 = vstv %s58
    %v149 = vadd.f32 %v146, %v148
    %v150 = vadd.f32 %v147, %v148
    %v151 = vstv %s27
    %v152 = vmul.f32 %v151, %v24
    %v153 = vmul.f32 %v151, %v25
    %v154 = vstv %s35
    %v155 = vmul.f32 %v154, %v24
    %v156 = vmul.f32 %v154, %v25
    %v159 = vrot.slane %v155, 1
    %v160 = vrot.slane %v156, 1
    %v163 = vadd.f32 %v152, %v159
    %v164 = vadd.f32 %v153, %v160
    %v165 = vstv %s43
    %v166 = vmul.f32 %v165, %v24
    %v167 = vmul.f32 %v165, %v25
    %v170 = vrot.slane %v166, 2
    %v171 = vrot.slane %v167, 2
    %v174 = vadd.f32 %v163, %v170
    %v175 = vadd.f32 %v164, %v171
    %v176 = vstv %s51
    %v177 = vmul.f32 %v176, %v24
    %v178 = vmul.f32 %v176, %v25
    %v181 = vrot.slane %v177, 3
    %v182 = vrot.slane %v178, 3
    %v185 = vadd.f32 %v174, %v181
    %v186 = vadd.f32 %v175, %v182
    %v187 = vstv %s59
    %v188 = vadd.f32 %v185, %v187
    %v189 = vadd.f32 %v186, %v187
    %v190 = vstv %s28
    %v191 = vmul.f32 %v190, %v24
    %v192 = vmul.f32 %v190, %v25
    %v193 = vstv %s36
    %v194 = vmul.f32 %v193, %v24
    %v195 = vmul.f32 %v193, %v25
    %v198 = vrot.slane %v194, 1
    %v199 = vrot.slane %v195, 1
    %v202 = vadd.f32 %v191, %v198
    %v203 = vadd.f32 %v192, %v199
    %v204 = vstv %s44
    %v205 = vmul.f32 %v204, %v24
    %v206 = vmul.f32 %v204, %v25
    %v209 = vrot.slane %v205, 2
    %v210 = vrot.slane %v206, 2
    %v213 = vadd.f32 %v202, %v209
    %v214 = vadd.f32 %v203, %v210
    %v215 = vstv %s52
    %v216 = vmul.f32 %v215, %v24
    %v217 = vmul.f32 %v215, %v25
    %v220 = vrot.slane %v216, 3
    %v221 = vrot.slane %v217, 3
    %v224 = vadd.f32 %v213, %v220
    %v225 = vadd.f32 %v214, %v221
    %v226 = vstv %s60
    %v227 = vadd.f32 %v224, %v226
    %v228 = vadd.f32 %v225, %v226
    %v229 = vstv %s29
    %v230 = vmul.f32 %v229, %v24
    %v231 = vmul.f32 %v229, %v25
    %v232 = vstv %s37
    %v233 = vmul.f32 %v232, %v24
    %v234 = vmul.f32 %v232, %v25
    %v237 = vrot.slane %v233, 1
    %v238 = vrot.slane %v234, 1
    %v241 = vadd.f32 %v230, %v237
    %v242 = vadd.f32 %v231, %v238
    %v243 = vstv %s45
    %v244 = vmul.f32 %v243, %v24
    %v245 = vmul.f32 %v243, %v25
    %v248 = vrot.slane %v244, 2
    %v249 = vrot.slane %v245, 2
    %v252 = vadd.f32 %v241, %v248
    %v253 = vadd.f32 %v242, %v249
    %v254 = vstv %s53
    %v255 = vmul.f32 %v254, %v24
    %v256 = vmul.f32 %v254, %v25
    %v259 = vrot.slane %v255, 3
    %v260 = vrot.slane %v256, 3
    %v263 = vadd.f32 %v252, %v259
    %v264 = vadd.f32 %v253, %v260
    %v265 = vstv %s61
    %v266 = vadd.f32 %v263, %v265
    %v267 = vadd.f32 %v264, %v265
    %v268 = vstv %s30
    %v269 = vmul.f32 %v268, %v24
    %v270 = vmul.f32 %v268, %v25
    %v271 = vstv %s38
    %v272 = vmul.f32 %v271, %v24
    %v273 = vmul.f32 %v271, %v25
    %v276 = vrot.slane %v272, 1
    %v277 = vrot.slane %v273, 1
    %v280 = vadd.f32 %v269, %v276
    %v281 = vadd.f32 %v270, %v277
    %v282 = vstv %s46
    %v283 = vmul.f32 %v282, %v24
    %v284 = vmul.f32 %v282, %v25
    %v287 = vrot.slane %v283, 2
    %v288 = vrot.slane %v284, 2
    %v291 = vadd.f32 %v280, %v287
    %v292 = vadd.f32 %v281, %v288
    %v293 = vstv %s54
    %v294 = vmul.f32 %v293, %v24
    %v295 = vmul.f32 %v293, %v25
    %v298 = vrot.slane %v294, 3
    %v299 = vrot.slane %v295, 3
    %v302 = vadd.f32 %v291, %v298
    %v303 = vadd.f32 %v292, %v299
    %v304 = vstv %s62
    %v305 = vadd.f32 %v302, %v304
    %v306 = vadd.f32 %v303, %v304
    %v307 = vstv %s31
    %v308 = vmul.f32 %v307, %v24
    %v309 = vmul.f32 %v307, %v25
    %v310 = vstv %s39
    %v311 = vmul.f32 %v310, %v24
    %v312 = vmul.f32 %v310, %v25
    %v315 = vrot.slane %v311, 1
    %v316 = vrot.slane %v312, 1
    %v319 = vadd.f32 %v308, %v315
    %v320 = vadd.f32 %v309, %v316
    %v321 = vstv %s47
    %v322 = vmul.f32 %v321, %v24
    %v323 = vmul.f32 %v321, %v25
    %v326 = vrot.slane %v322, 2
    %v327 = vrot.slane %v323, 2
    %v330 = vadd.f32 %v319, %v326
    %v331 = vadd.f32 %v320, %v327
    %v332 = vstv %s55
    %v333 = vmul.f32 %v332, %v24
    %v334 = vmul.f32 %v332, %v25
    %v337 = vrot.slane %v333, 3
    %v338 = vrot.slane %v334, 3
    %v341 = vadd.f32 %v330, %v337
    %v342 = vadd.f32 %v331, %v338
    %v343 = vstv %s63
    %v344 = vadd.f32 %v341, %v343
    %v345 = vadd.f32 %v342, %v343
    %v346 = vstv %s32
    %v347 = vmul.f32 %v346, %v24
    %v348 = vmul.f32 %v346, %v25
    %v349 = vstv %s40
    %v350 = vmul.f32 %v349, %v24
    %v351 = vmul.f32 %v349, %v25
    %v354 = vrot.slane %v350, 1
    %v355 = vrot.slane %v351, 1
    %v358 = vadd.f32 %v347, %v354
    %v359 = vadd.f32 %v348, %v355
    %v360 = vstv %s48
    %v361 = vmul.f32 %v360, %v24
    %v362 = vmul.f32 %v360, %v25
    %v365 = vrot.slane %v361, 2
    %v366 = vrot.slane %v362, 2
    %v369 = vadd.f32 %v358, %v365
    %v370 = vadd.f32 %v359, %v366
    %v371 = vstv %s56
    %v372 = vmul.f32 %v371, %v24
    %v373 = vmul.f32 %v371, %v25
    %v376 = vrot.slane %v372, 3
    %v377 = vrot.slane %v373, 3
    %v380 = vadd.f32 %v369, %v376
    %v381 = vadd.f32 %v370, %v377
    %v382 = vstv %s64
    %v383 = vadd.f32 %v380, %v382
    %v384 = vadd.f32 %v381, %v382
    %v385 = vstv %s33
    %v386 = vmul.f32 %v385, %v24
    %v387 = vmul.f32 %v385, %v25
    %v388 = vstv %s41
    %v389 = vmul.f32 %v388, %v24
    %v390 = vmul.f32 %v388, %v25
    %v393 = vrot.slane %v389, 1
    %v394 = vrot.slane %v390, 1
    %v397 = vadd.f32 %v386, %v393
    %v398 = vadd.f32 %v387, %v394
    %v399 = vstv %s49
    %v400 = vmul.f32 %v399, %v24
    %v401 = vmul.f32 %v399, %v25
    %v404 = vrot.slane %v400, 2
    %v405 = vrot.slane %v401, 2
    %v408 = vadd.f32 %v397, %v404
    %v409 = vadd.f32 %v398, %v405
    %v410 = vstv %s57
    %v411 = vmul.f32 %v410, %v24
    %v412 = vmul.f32 %v410, %v25
    %v415 = vrot.slane %v411, 3
    %v416 = vrot.slane %v412, 3
    %v419 = vadd.f32 %v408, %v415
    %v420 = vadd.f32 %v409, %v416
    %v421 = vstv %s65
    %v422 = vadd.f32 %v419, %v421
    %v423 = vadd.f32 %v420, %v421
    %v424 = vstv %s66
    %v425 = vmul.f32 %v424, %v149
    %v426 = vmul.f32 %v424, %v150
    %v427 = vstv %s70
    %v428 = vmul.f32 %v427, %v188
    %v429 = vmul.f32 %v427, %v189
    %v430 = vadd.f32 %v425, %v428
    %v431 = vadd.f32 %v426, %v429
    %v432 = vstv %s74
    %v433 = vmul.f32 %v432, %v227
    %v434 = vmul.f32 %v432, %v228
    %v435 = vadd.f32 %v430, %v433
    %v436 = vadd.f32 %v431, %v434
    %v437 = vstv %s78
    %v438 = vmul.f32 %v437, %v266
    %v439 = vmul.f32 %v437, %v267
    %v440 = vadd.f32 %v435, %v438
    %v441 = vadd.f32 %v436, %v439
    %v442 = vstv %s82
    %v443 = vmul.f32 %v442, %v305
    %v444 = vmul.f32 %v442, %v306
    %v445 = vadd.f32 %v440, %v443
    %v446 = vadd.f32 %v441, %v444
    %v447 = vstv %s86
    %v448 = vmul.f32 %v447, %v344
    %v449 = vmul.f32 %v447, %v345
    %v450 = vadd.f32 %v445, %v448
    %v451 = vadd.f32 %v446, %v449
    %v452 = vstv %s90
    %v453 = vmul.f32 %v452, %v383
    %v454 = vmul.f32 %v452, %v384
    %v455 = vadd.f32 %v450, %v453
    %v456 = vadd.f32 %v451, %v454
    %v457 = vstv %s94
    %v458 = vmul.f32 %v457, %v422
    %v459 = vmul.f32 %v457, %v423
    %v460 = vadd.f32 %v455, %v458
    %v461 = vadd.f32 %v456, %v459
    %v462 = vstv %s98
    %v463 = vadd.f32 %v460, %v462
    %v464 = vadd.f32 %v461, %v462
    %v465 = vstv %s67
    %v466 = vmul.f32 %v465, %v149
    %v467 = vmul.f32 %v465, %v150
    %v468 = vstv %s71
    %v469 = vmul.f32 %v468, %v188
    %v470 = vmul.f32 %v468, %v189
    %v471 = vadd.f32 %v466, %v469
    %v472 = vadd.f32 %v467, %v470
    %v473 = vstv %s75
    %v474 = vmul.f32 %v473, %v227
    %v475 = vmul.f32 %v473, %v228
    %v476 = vadd.f32 %v471, %v474
    %v477 = vadd.f32 %v472, %v475
    %v478 = vstv %s79
    %v479 = vmul.f32 %v478, %v266
    %v480 = vmul.f32 %v478, %v267
    %v481 = vadd.f32 %v476, %v479
    %v482 = vadd.f32 %v477, %v480
    %v483 = vstv %s83
    %v484 = vmul.f32 %v483, %v305
    %v485 = vmul.f32 %v483, %v306
    %v486 = vadd.f32 %v481, %v484
    %v487 = vadd.f32 %v482, %v485
    %v488 = vstv %s87
    %v489 = vmul.f32 %v488, %v344
    %v490 = vmul.f32 %v488, %v345
    %v491 = vadd.f32 %v486, %v489
    %v492 = vadd.f32 %v487, %v490
    %v493 = vstv %s91
    %v494 = vmul.f32 %v493, %v383
    %v495 = vmul.f32 %v493, %v384
    %v496 = vadd.f32 %v491, %v494
    %v497 = vadd.f32 %v492, %v495
    %v498 = vstv %s95
    %v499 = vmul.f32 %v498, %v422
    %v500 = vmul.f32 %v498, %v423
    %v501 = vadd.f32 %v496, %v499
    %v502 = vadd.f32 %v497, %v500
    %v503 = vstv %s99
    %v504 = vadd.f32 %v501, %v503
    %v505 = vadd.f32 %v502, %v503
    %v506 = vstv %s68
    %v507 = vmul.f32 %v506, %v149
    %v508 = vmul.f32 %v506, %v150
    %v509 = vstv %s72
    %v510 = vmul.f32 %v509, %v188
    %v511 = vmul.f32 %v509, %v189
    %v512 = vadd.f32 %v507, %v510
    %v513 = vadd.f32 %v508, %v511
    %v514 = vstv %s76
    %v515 = vmul.f32 %v514, %v227
    %v516 = vmul.f32 %v514, %v228
    %v517 = vadd.f32 %v512, %v515
    %v518 = vadd.f32 %v513, %v516
    %v519 = vstv %s80
    %v520 = vmul.f32 %v519, %v266
    %v521 = vmul.f32 %v519, %v267
    %v522 = vadd.f32 %v517, %v520
    %v523 = vadd.f32 %v518, %v521
    %v524 = vstv %s84
    %v525 = vmul.f32 %v524, %v305
    %v526 = vmul.f32 %v524, %v306
    %v527 = vadd.f32 %v522, %v525
    %v528 = vadd.f32 %v523, %v526
    %v529 = vstv %s88
    %v530 = vmul.f32 %v529, %v344
    %v531 = vmul.f32 %v529, %v345
    %v532 = vadd.f32 %v527, %v530
    %v533 = vadd.f32 %v528, %v531
    %v534 = vstv %s92
    %v535 = vmul.f32 %v534, %v383
    %v536 = vmul.f32 %v534, %v384
    %v537 = vadd.f32 %v532, %v535
    %v538 = vadd.f32 %v533, %v536
    %v539 = vstv %s96
    %v540 = vmul.f32 %v539, %v422
    %v541 = vmul.f32 %v539, %v423
    %v542 = vadd.f32 %v537, %v540
    %v543 = vadd.f32 %v538, %v541
    %v544 = vstv %s100
    %v545 = vadd.f32 %v542, %v544
    %v546 = vadd.f32 %v543, %v544
    %v547 = vstv %s69
    %v548 = vmul.f32 %v547, %v149
    %v549 = vmul.f32 %v547, %v150
    %v550 = vstv %s73
    %v551 = vmul.f32 %v550, %v188
    %v552 = vmul.f32 %v550, %v189
    %v553 = vadd.f32 %v548, %v551
    %v554 = vadd.f32 %v549, %v552
    %v555 = vstv %s77
    %v556 = vmul.f32 %v555, %v227
    %v557 = vmul.f32 %v555, %v228
    %v558 = vadd.f32 %v553, %v556
    %v559 = vadd.f32 %v554, %v557
    %v560 = vstv %s81
    %v561 = vmul.f32 %v560, %v266
    %v562 = vmul.f32 %v560, %v267
    %v563 = vadd.f32 %v558, %v561
    %v564 = vadd.f32 %v559, %v562
    %v565 = vstv %s85
    %v566 = vmul.f32 %v565, %v305
    %v567 = vmul.f32 %v565, %v306
    %v568 = vadd.f32 %v563, %v566
    %v569 = vadd.f32 %v564, %v567
    %v570 = vstv %s89
    %v571 = vmul.f32 %v570, %v344
    %v572 = vmul.f32 %v570, %v345
    %v573 = vadd.f32 %v568, %v571
    %v574 = vadd.f32 %v569, %v572
    %v575 = vstv %s93
    %v576 = vmul.f32 %v575, %v383
    %v577 = vmul.f32 %v575, %v384
    %v578 = vadd.f32 %v573, %v576
    %v579 = vadd.f32 %v574, %v577
    %v580 = vstv %s97
    %v581 = vmul.f32 %v580, %v422
    %v582 = vmul.f32 %v580, %v423
    %v583 = vadd.f32 %v578, %v581
    %v584 = vadd.f32 %v579, %v582
    %v585 = vstv %s101
    %v586 = vadd.f32 %v583, %v585
    %v587 = vadd.f32 %v584, %v585
    %v588 = vstv %s102
    %v589 = vmul.f32 %v588, %v463
    %v590 = vmul.f32 %v588, %v464
    %v591 = vstv %s104
    %v592 = vmul.f32 %v591, %v504
    %v593 = vmul.f32 %v591, %v505
    %v594 = vadd.f32 %v589, %v592
    %v595 = vadd.f32 %v590, %v593
    %v596 = vstv %s106
    %v597 = vmul.f32 %v596, %v545
    %v598 = vmul.f32 %v596, %v546
    %v599 = vadd.f32 %v594, %v597
    %v600 = vadd.f32 %v595, %v598
    %v601 = vstv %s108
    %v602 = vmul.f32 %v601, %v586
    %v603 = vmul.f32 %v601, %v587
    %v604 = vadd.f32 %v599, %v602
    %v605 = vadd.f32 %v600, %v603
    %v606 = vstv %s110
    %v607 = vadd.f32 %v604, %v606
    %v608 = vadd.f32 %v605, %v606
    %v609 = vstv %s103
    %v610 = vmul.f32 %v609, %v463
    %v611 = vmul.f32 %v609, %v464
    %v612 = vstv %s105
    %v613 = vmul.f32 %v612, %v504
    %v614 = vmul.f32 %v612, %v505
    %v615 = vadd.f32 %v610, %v613
    %v616 = vadd.f32 %v611, %v614
    %v617 = vstv %s107
    %v618 = vmul.f32 %v617, %v545
    %v619 = vmul.f32 %v617, %v546
    %v620 = vadd.f32 %v615, %v618
    %v621 = vadd.f32 %v616, %v619
    %v622 = vstv %s109
    %v623 = vmul.f32 %v622, %v586
    %v624 = vmul.f32 %v622, %v587
    %v625 = vadd.f32 %v620, %v623
    %v626 = vadd.f32 %v621, %v624
    %v627 = vstv %s111
    %v628 = vadd.f32 %v625, %v627
    %v629 = vadd.f32 %v626, %v627
    %v632 = vrot.slane %v628, 7
    %v633 = vrot.slane %v629, 7
    %v638 = vrot.slane %v607, 2
    %v639 = vrot.slane %v608, 2
    %v642 = vrot.slane %v628, 1
    %v643 = vrot.slane %v629, 1
    %vm646 = vcmask 1040384
    %v647 = vsel %vm646, %v607, %v632
    %v648 = vsel %vm646, %v608, %v633
    %vm649 = vcmask 1041408
    %v650 = vsel %vm649, %v647, %v638
    %v651 = vsel %vm649, %v648, %v639
    %vm652 = vcmask 1042432
    %v653 = vsel %vm652, %v650, %v642
    %v654 = vsel %vm652, %v651, %v643
    %v655 = vlaneseq
    %v656 = vshrl.u32 %v655, 7
    %v657 = vlaneseq
    %v658 = vand.u32 %v657, 127
    %v659 = vadd.s32 %v658, 128
    %v660 = vmul.u32 %v656, 4
    %vm661 = vcmp.eq.s32.totalorder %v658, %v660
    %vm662 = vcmp.eq.s32.totalorder %v659, %v660
    %v663 = vsel %vm661, 1.0, 0.0
    %v664 = vsel %vm662, 1.0, 0.0
    %v665 = vadd.s32 %v660, 64
    %vm666 = vcmp.eq.s32.totalorder %v658, %v665
    %vm667 = vcmp.eq.s32.totalorder %v659, %v665
    %v668 = vsel %vm666, 1.0, 0.0
    %v669 = vsel %vm667, 1.0, 0.0
    %v670 = vadd.s32 %v660, 128
    %vm671 = vcmp.eq.s32.totalorder %v658, %v670
    %vm672 = vcmp.eq.s32.totalorder %v659, %v670
    %v673 = vsel %vm671, 1.0, 0.0
    %v674 = vsel %vm672, 1.0, 0.0
    %v675 = vadd.s32 %v660, 192
    %vm676 = vcmp.eq.s32.totalorder %v658, %v675
    %vm677 = vcmp.eq.s32.totalorder %v659, %v675
    %v678 = vsel %vm676, 1.0, 0.0
    %v679 = vsel %vm677, 1.0, 0.0
    %v682 = vrot.slane %v668, 4
    %v683 = vrot.slane %v669, 4
    %v688 = vrot.slane %v678, 4
    %v689 = vrot.slane %v679, 4
    %vm692 = vcmask 1043456
    %v693 = vsel %vm692, %v663, %v682
    %v694 = vsel %vm692, %v664, %v683
    %v695 = vsel %vm692, %v673, %v688
    %v696 = vsel %vm692, %v674, %v689
    %v699 = vcombine.low %v653, %v654
    %v701 = vunpack.c.l.s4 1966171168
    %v702 = vunpack.c.0.s8 %v701
    %v703 = vlaneseq
    %v704 = vshrl.u32 %v703, 7
    %v705 = vsub.s32 %v702, %v704
    %v706 = vrot.slane %v699, %v705
    %v707 = vcombine.high %v706, %v706
    %v709 = vunpack.c.l.s4 1966171168
    %v710 = vunpack.c.0.s8 %v709
    %v711 = vlaneseq
    %v712 = vshrl.u32 %v711, 7
    %v713 = vsub.s32 %v710, %v712
    %v714 = vrot.slane %v706, %v713
    %v716 = vunpack.c.l.s4 1966171168
    %v717 = vunpack.c.0.s8 %v716
    %v718 = vlaneseq
    %v719 = vshrl.u32 %v718, 7
    %v720 = vsub.s32 %v717, %v719
    %v721 = vrot.slane %v707, %v720
    %v722 = vcombine.high %v714, %v714
    %v723 = vcombine.high %v721, %v721
    %v724 = vlaneseq
    %v725 = vshrl.u32 %v724, 7
    %v726 = vsub.s32 0, %v725
    %v727 = vrot.slane %v714, %v726
    %v728 = vlaneseq
    %v729 = vshrl.u32 %v728, 7
    %v730 = vsub.s32 1, %v729
    %v731 = vrot.slane %v714, %v730
    %v732 = vlaneseq
    %v733 = vshrl.u32 %v732, 7
    %v734 = vsub.s32 0, %v733
    %v735 = vrot.slane %v721, %v734
    %v736 = vlaneseq
    %v737 = vshrl.u32 %v736, 7
    %v738 = vsub.s32 1, %v737
    %v739 = vrot.slane %v721, %v738
    %v740 = vlaneseq
    %v741 = vshrl.u32 %v740, 7
    %v742 = vsub.s32 0, %v741
    %v743 = vrot.slane %v722, %v742
    %v744 = vlaneseq
    %v745 = vshrl.u32 %v744, 7
    %v746 = vsub.s32 1, %v745
    %v747 = vrot.slane %v722, %v746
    %v748 = vlaneseq
    %v749 = vshrl.u32 %v748, 7
    %v750 = vsub.s32 0, %v749
    %v751 = vrot.slane %v723, %v750
    %v752 = vlaneseq
    %v753 = vshrl.u32 %v752, 7
    %v754 = vsub.s32 1, %v753
    %v755 = vrot.slane %v723, %v754
    %v764 = vmul.f32 %v727, %v693
    %v765 = vmul.f32 %v731, %v694
    %v766 = vmul.f32 %v727, %v695
    %v767 = vmul.f32 %v731, %v696
    %v768 = vmul.f32 %v735, %v693
    %v769 = vmul.f32 %v739, %v694
    %v770 = vmul.f32 %v735, %v695
    %v771 = vmul.f32 %v739, %v696
    %v772 = vmul.f32 %v743, %v693
    %v773 = vmul.f32 %v747, %v694
    %v774 = vmul.f32 %v743, %v695
    %v775 = vmul.f32 %v747, %v696
    %v776 = vmul.f32 %v751, %v693
    %v777 = vmul.f32 %v755, %v694
    %v778 = vmul.f32 %v751, %v695
    %v779 = vmul.f32 %v755, %v696
    %v780 = vadd.f32 %v764, %v765
    %781 = vadd.xlane.f32.xlu0 %v780
    %v782 = vpop.xlane.xlu0 %781
    %v783 = vadd.f32 %v766, %v767
    %784 = vadd.xlane.f32.xlu0 %v783
    %v785 = vpop.xlane.xlu0 %784
    %v786 = vadd.f32 %v768, %v769
    %787 = vadd.xlane.f32.xlu0 %v786
    %v788 = vpop.xlane.xlu0 %787
    %v789 = vadd.f32 %v770, %v771
    %790 = vadd.xlane.f32.xlu0 %v789
    %v791 = vpop.xlane.xlu0 %790
    %v792 = vadd.f32 %v772, %v773
    %793 = vadd.xlane.f32.xlu0 %v792
    %v794 = vpop.xlane.xlu0 %793
    %v795 = vadd.f32 %v774, %v775
    %796 = vadd.xlane.f32.xlu0 %v795
    %v797 = vpop.xlane.xlu0 %796
    %v798 = vadd.f32 %v776, %v777
    %799 = vadd.xlane.f32.xlu0 %v798
    %v800 = vpop.xlane.xlu0 %799
    %v801 = vadd.f32 %v778, %v779
    %802 = vadd.xlane.f32.xlu0 %v801
    %v803 = vpop.xlane.xlu0 %802
    %v812 = vlaneseq
    %v813 = vshrl.u32 %v812, 7
    %v814 = vsub.s32 %v658, %v813
    %v815 = vrot.slane %v782, %v814
    %v816 = vadd.s32 %v658, 4294967288
    %v817 = vlaneseq
    %v818 = vshrl.u32 %v817, 7
    %v819 = vsub.s32 %v816, %v818
    %v820 = vrot.slane %v785, %v819
    %vm821 = vcmask 130112
    %v822 = vsel %vm821, %v820, %v815
    %v823 = vlaneseq
    %v824 = vshrl.u32 %v823, 7
    %v825 = vsub.s32 %v658, %v824
    %v826 = vrot.slane %v788, %v825
    %v827 = vlaneseq
    %v828 = vshrl.u32 %v827, 7
    %v829 = vsub.s32 %v816, %v828
    %v830 = vrot.slane %v791, %v829
    %v831 = vsel %vm821, %v830, %v826
    %v832 = vlaneseq
    %v833 = vshrl.u32 %v832, 7
    %v834 = vsub.s32 %v658, %v833
    %v835 = vrot.slane %v794, %v834
    %v836 = vlaneseq
    %v837 = vshrl.u32 %v836, 7
    %v838 = vsub.s32 %v816, %v837
    %v839 = vrot.slane %v797, %v838
    %v840 = vsel %vm821, %v839, %v835
    %v841 = vlaneseq
    %v842 = vshrl.u32 %v841, 7
    %v843 = vsub.s32 %v658, %v842
    %v844 = vrot.slane %v800, %v843
    %v845 = vlaneseq
    %v846 = vshrl.u32 %v845, 7
    %v847 = vsub.s32 %v816, %v846
    %v848 = vrot.slane %v803, %v847
    %v849 = vsel %vm821, %v848, %v844
    %vm850 = vcmask 1041409
    %v851 = vsel %vm850, %v831, %v822
    %vm852 = vcmask 1042434
    %v853 = vsel %vm852, %v840, %v851
    %vm854 = vcmask 1043459
    %v855 = vsel %vm854, %v849, %v853
    %vm857 = vcmask 125952
    %858 = vst.msk [vmem:[%s2] sm:$0xf] %vm857, %v855
    // Predicated region
    $region14: #{small_conv_net_forward.1} parent=1 // pred_check
      _
    $region15: #{small_conv_net_forward.1} parent=1 // pred_check_branch
      %860 = sbr.rel (0) target = $region17
    $region16: #{small_conv_net_forward.1} parent=1 // pred_region
      _
    $region17: #{small_conv_net_forward.1} parent=1 // pred_fallthru
      _
    // Predicated region
    $region18: #{small_conv_net_forward.1} parent=1 // pred_check
      _
    $region19: #{small_conv_net_forward.1} parent=1 // pred_check_branch
      %862 = sbr.rel (0) target = $region21
    $region20: #{small_conv_net_forward.1} parent=1 // pred_region
      _
    $region21: #{small_conv_net_forward.1} parent=1 // pred_fallthru
      _
    %863 = vsyncpa [#allocation3], 1

</llo_original>
